<compile_context>
chip_gen: v5e
topology: v5e:2x2
jax: 0.10.0
libtpu: 0.0.40
codegen_flags: <defaults>
</compile_context>

<pallas_src>
import math
import functools

import jax
import jax.numpy as jnp
from jax.experimental import pallas as pl
from jax.experimental.pallas import tpu as pltpu


class SequenceTooLongError(Exception):
    pass


def _embed_kernel(ids_ref, table_ref, pe_ref, out_ref, *, scale, batch):
    """Embed one tile of tokens: out = table[ids] * sqrt(D) + pe[pos].

    ids_ref:   (tile_t, 1)  int32  token ids for this tile (VMEM)
    table_ref: (V, D)       f32    whole embedding table, resident in VMEM
    pe_ref:    (tile_l, D)  f32    PE rows for the positions covered by the tile
    out_ref:   (tile_t, D)  f32    output tile; tile_t == tile_l * batch
    """
    tile_t = out_ref.shape[0]
    vocab = table_ref.shape[0]
    tile_l = pe_ref.shape[0]
    f32 = jnp.float32

    ids = ids_ref[...]                                                # (tile_t, 1)

    # One-hot over the vocabulary, carrying the sqrt(D) scale -> MXU gather.
    vocab_iota = jax.lax.broadcasted_iota(jnp.int32, (tile_t, vocab), 1)
    onehot_tok = jnp.where(ids == vocab_iota, scale, 0.0).astype(f32)  # (tile_t, V)
    emb = jnp.dot(onehot_tok, table_ref[...],
                  preferred_element_type=f32,
                  precision=jax.lax.Precision.HIGHEST)                 # (tile_t, D)

    # One-hot over local positions (pos = token // batch), built with range
    # compares (no per-element integer divide) -> tiny MXU matmul broadcasts
    # each PE row over the batch dimension of the tile.
    tok_iota = jax.lax.broadcasted_iota(jnp.int32, (tile_t, tile_l), 0)
    pos_iota = jax.lax.broadcasted_iota(jnp.int32, (tile_t, tile_l), 1)
    lo = pos_iota * batch
    onehot_pos = jnp.where((tok_iota >= lo) & (tok_iota < lo + batch),
                           1.0, 0.0).astype(f32)                       # (tile_t, tile_l)
    pe = jnp.dot(onehot_pos, pe_ref[...],
                 preferred_element_type=f32,
                 precision=jax.lax.Precision.HIGHEST)                  # (tile_t, D)

    out_ref[...] = (emb + pe).astype(out_ref.dtype)


def _pick_tile_l(L, B, D, target_bytes=1 << 20):
    """Sequence positions per tile: a multiple of 8 dividing L (or L itself).

    Prefers tiles that (a) keep output blocks ~target_bytes and (b) give a
    grid of >= 2 steps so the "parallel" axis shards across v7x's 2 TCs.
    """
    cands = [c for c in range(8, L + 1, 8) if L % c == 0]
    if not cands:
        return L                                   # small/odd L: one full tile
    target_rows = max(8, target_bytes // (D * 4))
    target_l = max(8, target_rows // max(B, 1))
    good = [c for c in cands if c <= target_l] or [min(cands)]
    multi = [c for c in good if c < L]             # prefer grid >= 2
    return max(multi) if multi else max(good)


def embeddings_forward(source, table, pe_full, *, step=None, tile_l=None):
    """source: (L, B, 1) int32; table: (V, D) float32; pe_full: (max_len, D)."""
    L, B, nfeat = source.shape
    assert nfeat == 1, "only the word feature (no extra features) is supported"
    # TODO(synk): extra feature lookups + feat_merge (concat/sum/mlp) paths.
    V, D = table.shape
    step = 0 if step is None else int(step)        # step must be a Python int
    if pe_full.shape[0] < step + L:
        raise SequenceTooLongError(
            f"Sequence is {L + step} but PositionalEncoding is limited to "
            f"{pe_full.shape[0]}.")

    if tile_l is None:
        tile_l = _pick_tile_l(L, B, D)
    assert L % tile_l == 0
    assert tile_l == L or tile_l % 8 == 0
    tile_t = tile_l * B
    T = L * B
    grid = L // tile_l

    # Clamp ids: VMEM refs have no runtime bounds check (PyTorch would raise).
    ids = jnp.clip(source[..., 0].reshape(T, 1).astype(jnp.int32), 0, V - 1)
    pe_slice = pe_full[step:step + L].astype(table.dtype)       # (L, D), unbroadcast

    kernel = functools.partial(_embed_kernel, scale=math.sqrt(D), batch=B)

    itemsize = jnp.dtype(table.dtype).itemsize
    cost = pl.CostEstimate(
        flops=2 * T * D * (V + tile_l) + T * D,
        transcendentals=0,
        bytes_accessed=(T * D + V * D + L * D) * itemsize + T * 4)

    out_flat = pl.pallas_call(
        kernel,
        out_shape=jax.ShapeDtypeStruct((T, D), table.dtype),
        grid_spec=pltpu.PrefetchScalarGridSpec(
            num_scalar_prefetch=0,
            grid=(grid,),
            in_specs=[
                # token ids, blocked VMEM vector input
                pl.BlockSpec((tile_t, 1), lambda i: (i, 0)),
                # whole embedding table resident in VMEM (small vocab)
                pl.BlockSpec(memory_space=pltpu.MemorySpace.VMEM),
                # unbroadcast PE rows for this tile's positions
                pl.BlockSpec((tile_l, D), lambda i: (i, 0)),
            ],
            out_specs=pl.BlockSpec((tile_t, D), lambda i: (i, 0)),
        ),
        compiler_params=pltpu.CompilerParams(
            dimension_semantics=("parallel",),
        ),
        cost_estimate=cost,
    )(ids, table, pe_slice)

    return out_flat.reshape(L, B, D)
    # TODO(synk): dropout > 0 is not implemented (this config uses dropout=0).


def make_positional_encoding(dim, max_len=5000):
    if dim % 2 != 0:
        raise ValueError("dim must be even")
    position = jnp.arange(max_len, dtype=jnp.float32)[:, None]          # (max_len, 1)
    div_term = jnp.exp(jnp.arange(0, dim, 2, dtype=jnp.float32)
                       * -(math.log(10000.0) / dim))                    # (dim//2,)
    pe = jnp.zeros((max_len, dim), dtype=jnp.float32)
    pe = pe.at[:, 0::2].set(jnp.sin(position * div_term))
    pe = pe.at[:, 1::2].set(jnp.cos(position * div_term))
    return pe


if __name__ == "__main__":
    # Module config: word_vec_size=32, word_vocab_size=32, padding_idx=1,
    # position_encoding=True, no extra features, dropout=0.
    L, B, D, V = 16, 2, 32, 32      # L=16 so the grid has 2 parallel steps
    pad_idx = 1

    key = jax.random.PRNGKey(0)
    k_w, k_s = jax.random.split(key)

    # nn.Embedding init: N(0,1), padding row zeroed
    table = jax.random.normal(k_w, (V, D), dtype=jnp.float32)
    table = table.at[pad_idx].set(0.0)

    pe_full = make_positional_encoding(D, max_len=128)

    # source indices (L, B, 1)
    source = jax.random.randint(k_s, (L, B, 1), 0, V, dtype=jnp.int32)

    out = embeddings_forward(source, table, pe_full, step=None)
    out = jax.block_until_ready(out)

    # pure-JAX reference check
    ref = table[source[..., 0]] * math.sqrt(D) + pe_full[:L][:, None, :]
    assert out.shape == (L, B, D)
    assert jnp.allclose(out, ref, atol=1e-4, rtol=1e-4), "mismatch vs reference"

    print("KERNEL_OK")
</pallas_src>

<mosaic_0001>
module attributes {stable_mosaic.version = 11 : i64} {
  func.func @_embed_kernel(%arg0: i32, %arg1: memref<16x1xi32, #tpu.memory_space<vmem>>, %arg2: memref<32x32xf32, #tpu.memory_space<vmem>>, %arg3: memref<8x32xf32, #tpu.memory_space<vmem>>, %arg4: memref<16x32xf32, #tpu.memory_space<vmem>>) attributes {dimension_semantics = [#tpu.dimension_semantics<parallel>], iteration_bounds = array<i64: 2>, scalar_prefetch = 0 : i64, scratch_operands = 0 : i64, tpu.core_type = #tpu.core_type<tc>, window_params = [{transform_indices = @transform_0, window_bounds = array<i64: 16, 1>}, {pipeline_mode = #tpu.pipeline_mode<synchronous>, transform_indices = @transform_1, window_bounds = array<i64: 32, 32>}, {transform_indices = @transform_2, window_bounds = array<i64: 8, 32>}, {transform_indices = @transform_3, window_bounds = array<i64: 16, 32>}]} {
    %c0 = arith.constant 0 : index
    %c0_0 = arith.constant 0 : index
    %0 = vector.load %arg1[%c0, %c0_0] : memref<16x1xi32, #tpu.memory_space<vmem>>, vector<16x1xi32>
    %1 = tpu.iota {dimensions = array<i32: 1>} : vector<16x32xi32>
    %2 = vector.broadcast %0 : vector<16x1xi32> to vector<16x32xi32>
    %3 = arith.cmpi eq, %2, %1 : vector<16x32xi32>
    %cst = arith.constant 5.65685415 : f32
    %cst_1 = arith.constant 0.000000e+00 : f32
    %4 = vector.broadcast %cst : f32 to vector<16x32xf32>
    %5 = vector.broadcast %cst_1 : f32 to vector<16x32xf32>
    %6 = arith.select %3, %4, %5 : vector<16x32xi1>, vector<16x32xf32>
    %c0_2 = arith.constant 0 : index
    %c0_3 = arith.constant 0 : index
    %7 = vector.load %arg2[%c0_2, %c0_3] : memref<32x32xf32, #tpu.memory_space<vmem>>, vector<32x32xf32>
    %cst_4 = arith.constant dense<0.000000e+00> : vector<16x32xf32>
    %8 = tpu.matmul %6, %7, %cst_4 {dimension_numbers = #tpu.dot_dimension_numbers<[1], [0], [0], [1], [0, 0, 1, 1], [], []>, precision = #tpu.contract_precision<fp32>} : vector<16x32xf32>, vector<32x32xf32>, vector<16x32xf32> -> vector<16x32xf32>
    %9 = tpu.iota {dimensions = array<i32: 0>} : vector<16x8xi32>
    %10 = tpu.iota {dimensions = array<i32: 1>} : vector<16x8xi32>
    %c2_i32 = arith.constant 2 : i32
    %11 = vector.broadcast %c2_i32 : i32 to vector<16x8xi32>
    %12 = arith.muli %10, %11 : vector<16x8xi32>
    %13 = arith.cmpi sge, %9, %12 : vector<16x8xi32>
    %c2_i32_5 = arith.constant 2 : i32
    %14 = vector.broadcast %c2_i32_5 : i32 to vector<16x8xi32>
    %15 = arith.addi %12, %14 : vector<16x8xi32>
    %16 = arith.cmpi slt, %9, %15 : vector<16x8xi32>
    %17 = arith.andi %13, %16 : vector<16x8xi1>
    %cst_6 = arith.constant 1.000000e+00 : f32
    %cst_7 = arith.constant 0.000000e+00 : f32
    %18 = vector.broadcast %cst_6 : f32 to vector<16x8xf32>
    %19 = vector.broadcast %cst_7 : f32 to vector<16x8xf32>
    %20 = arith.select %17, %18, %19 : vector<16x8xi1>, vector<16x8xf32>
    %c0_8 = arith.constant 0 : index
    %c0_9 = arith.constant 0 : index
    %21 = vector.load %arg3[%c0_8, %c0_9] : memref<8x32xf32, #tpu.memory_space<vmem>>, vector<8x32xf32>
    %cst_10 = arith.constant dense<0.000000e+00> : vector<16x32xf32>
    %22 = tpu.matmul %20, %21, %cst_10 {dimension_numbers = #tpu.dot_dimension_numbers<[1], [0], [0], [1], [0, 0, 1, 1], [], []>, precision = #tpu.contract_precision<fp32>} : vector<16x8xf32>, vector<8x32xf32>, vector<16x32xf32> -> vector<16x32xf32>
    %23 = arith.addf %8, %22 : vector<16x32xf32>
    %c0_11 = arith.constant 0 : index
    %c0_12 = arith.constant 0 : index
    %24 = vector.load %arg4[%c0_11, %c0_12] : memref<16x32xf32, #tpu.memory_space<vmem>>, vector<16x32xf32>
    tpu.vector_store %arg4[%c0_11, %c0_12], %23 {strides = array<i32>} : memref<16x32xf32, #tpu.memory_space<vmem>>, vector<16x32xf32>,
    return
  }
  func.func @transform_0(%arg0: i32) -> (i32, i32) {
    %c0_i32 = arith.constant 0 : i32
    %c0_i32_0 = arith.constant 0 : i32
    return %arg0, %c0_i32 : i32, i32
  }
  func.func @transform_1(%arg0: i32) -> (i32, i32) {
    %c0_i32 = arith.constant 0 : i32
    %c0_i32_0 = arith.constant 0 : i32
    %c0_i32_1 = arith.constant 0 : i32
    return %c0_i32, %c0_i32_0 : i32, i32
  }
  func.func @transform_2(%arg0: i32) -> (i32, i32) {
    %c0_i32 = arith.constant 0 : i32
    %c0_i32_0 = arith.constant 0 : i32
    return %arg0, %c0_i32 : i32, i32
  }
  func.func @transform_3(%arg0: i32) -> (i32, i32) {
    %c0_i32 = arith.constant 0 : i32
    %c0_i32_0 = arith.constant 0 : i32
    return %arg0, %c0_i32 : i32, i32
  }
}

</mosaic_0001>

<llo_original>
// kernel: tpu_custom_call.1
$region0: #{tpu_custom_call.1}
  #allocation0 [shape = 'u32[]', space=smem, size = 0x4, offset = 0x4, fixed_abs, tag = 'smem constant byte address 0x4 - core index']
  #allocation1 [shape = 'u32[72,128]{1,0:T(1,128)}', space=vmem, size = 0x9000, scoped, tag = 'internal scratch']
  %s0 = inlined_call_operand.vmem [shape: s32[32,1], index: 0, kind: input, shape index: {}]
  %s1 = inlined_call_operand.vmem [shape: f32[32,32], index: 1, kind: input, shape index: {}]
  %s2 = inlined_call_operand.hbm [shape: f32[16,32], index: 2, kind: input, shape index: {}]
  %s3 = inlined_call_operand.hbm [shape: f32[32,32], index: 3, kind: output, shape index: {}]
  %s4 = sld [smem:[#allocation0]]
  $region49: #{tpu_custom_call.1} parent=0
    _
  %s6 = ssub.s32 1, %s4
  %s7 = scalar_select 0, %s6, %s4
  $region1: #{tpu_custom_call.1} parent=0
    #allocation2 [shape = 'u8[8192]{0}', space=vmem, size = 0x2000, scoped, tag = 'input window, operand 2']
    #allocation3 [shape = 's32[2]{0}', space=sflag, size = 0x8, scoped, tag = 'scoped memory for tpu_custom_call.1']
    #allocation4 [shape = 's32[2]{0}', space=sflag, size = 0x8, scoped, tag = 'scoped memory for tpu_custom_call.1']
    #allocation5 [shape = 'u8[16384]{0}', space=vmem, size = 0x4000, scoped, tag = 'output window, operand 0']
    %8 = vsyncpa [#allocation3], 0
    %s9 = scalar_lea.sflag [#allocation3], 1
    %10 = vsyncpa %s9, 0
    %11 = vsyncpa [#allocation4], 0
    %s12 = scalar_lea.sflag [#allocation4], 1
    %13 = vsyncpa %s12, 0
    loop: start=0, step=1, limit=4
    $region2: #{tpu_custom_call.1} parent=1 // loop_pre_header
      _
    $region3: #{tpu_custom_call.1} parent=1 // loop_header
      %s15 = sphi 0, %s19
      %p16 = scmp.ge.s32.totalorder %s15, 4
      %s25 = sphi 0, %s27
      %s28 = sphi 0, %s25
      %s29 = sphi 0, %s28
      %s45 = sphi 0, %s29
      %s49 = sphi 0, %s49
      %s51 = sphi 0, %s49
      %s52 = sphi 0, %s51
      %s66 = sphi 0, %s52
      %s72 = sphi 0, %s74
      %s75 = sphi 0, %s72
      %s76 = sphi 0, %s75
      %s92 = sphi 0, %s76
      %s98 = sphi 0, %s100
      %s101 = sphi 0, %s98
      %s102 = sphi 0, %s101
      %s118 = sphi 0, %s102
    $region4: #{tpu_custom_call.1} parent=1 // loop_header_branch
      %18 = sbr.rel (%p16) target = $region8
    $region5: #{tpu_custom_call.1} parent=1 // loop_body
      %s20 = ssub.s32 %s15, 1
      %s21 = ssub.s32 %s15, 2
      %s22 = sadd.s32 %s15, 1
      %s23 = ssub.s32 %s15, %s22
      %p24 = scmp.eq.s32.totalorder %s23, 0
      %s26 = sadd.s32 %s25, 1
      %s27 = scalar_select %p24, %s25, %s26
      %p30 = pneg %p24
      %p31 = scmp.eq.s32.totalorder %s15, 1
      %p32 = por %p30, %p31
      %p33 = scmp.ne.s32.totalorder %s25, %s28
      %p34 = scmp.eq.s32.totalorder %s15, 0
      %p35 = por %p33, %p34
      %p36 = scmp.ne.s32.totalorder %s25, %s28
      %p37 = scmp.eq.s32.totalorder %s20, 1
      %p38 = por %p36, %p37
      %p39 = scmp.ne.s32.totalorder %s28, %s29
      %p40 = scmp.eq.s32.totalorder %s20, 0
      %p41 = por %p39, %p40
      %p42 = scmp.ne.s32.totalorder %s28, %s29
      %p43 = scmp.eq.s32.totalorder %s21, 1
      %p44 = por %p42, %p43
      %p46 = scmp.ne.s32.totalorder %s29, %s45
      %p47 = scmp.eq.s32.totalorder %s21, 0
      %p48 = por %p46, %p47
      %s50 = sadd.s32 %s49, 1
      %p53 = scmp.eq.s32.totalorder %s15, 1
      %p54 = scmp.ne.s32.totalorder %s49, %s51
      %p55 = scmp.eq.s32.totalorder %s15, 0
      %p56 = por %p54, %p55
      %p57 = scmp.ne.s32.totalorder %s49, %s51
      %p58 = scmp.eq.s32.totalorder %s20, 1
      %p59 = por %p57, %p58
      %p60 = scmp.ne.s32.totalorder %s51, %s52
      %p61 = scmp.eq.s32.totalorder %s20, 0
      %p62 = por %p60, %p61
      %p63 = scmp.ne.s32.totalorder %s51, %s52
      %p64 = scmp.eq.s32.totalorder %s21, 1
      %p65 = por %p63, %p64
      %p67 = scmp.ne.s32.totalorder %s52, %s66
      %p68 = scmp.eq.s32.totalorder %s21, 0
      %p69 = por %p67, %p68
      %s70 = ssub.s32 %s15, %s22
      %p71 = scmp.eq.s32.totalorder %s70, 0
      %s73 = sadd.s32 %s72, 1
      %s74 = scalar_select %p71, %s72, %s73
      %p77 = pneg %p71
      %p78 = scmp.eq.s32.totalorder %s15, 1
      %p79 = por %p77, %p78
      %p80 = scmp.ne.s32.totalorder %s72, %s75
      %p81 = scmp.eq.s32.totalorder %s15, 0
      %p82 = por %p80, %p81
      %p83 = scmp.ne.s32.totalorder %s72, %s75
      %p84 = scmp.eq.s32.totalorder %s20, 1
      %p85 = por %p83, %p84
      %p86 = scmp.ne.s32.totalorder %s75, %s76
      %p87 = scmp.eq.s32.totalorder %s20, 0
      %p88 = por %p86, %p87
      %p89 = scmp.ne.s32.totalorder %s75, %s76
      %p90 = scmp.eq.s32.totalorder %s21, 1
      %p91 = por %p89, %p90
      %p93 = scmp.ne.s32.totalorder %s76, %s92
      %p94 = scmp.eq.s32.totalorder %s21, 0
      %p95 = por %p93, %p94
      %s96 = ssub.s32 %s15, %s22
      %p97 = scmp.eq.s32.totalorder %s96, 0
      %s99 = sadd.s32 %s98, 1
      %s100 = scalar_select %p97, %s98, %s99
      %p103 = pneg %p97
      %p104 = scmp.eq.s32.totalorder %s15, 1
      %p105 = por %p103, %p104
      %p106 = scmp.ne.s32.totalorder %s98, %s101
      %p107 = scmp.eq.s32.totalorder %s15, 0
      %p108 = por %p106, %p107
      %p109 = scmp.ne.s32.totalorder %s98, %s101
      %p110 = scmp.eq.s32.totalorder %s20, 1
      %p111 = por %p109, %p110
      %p112 = scmp.ne.s32.totalorder %s101, %s102
      %p113 = scmp.eq.s32.totalorder %s20, 0
      %p114 = por %p112, %p113
      %p115 = scmp.ne.s32.totalorder %s101, %s102
      %p116 = scmp.eq.s32.totalorder %s21, 1
      %p117 = por %p115, %p116
      %p119 = scmp.ne.s32.totalorder %s102, %s118
      %p120 = scmp.eq.s32.totalorder %s21, 0
      %p121 = por %p119, %p120
      %p122 = scmp.le.s32.totalorder 1, %s15
      %p123 = scmp.lt.s32.totalorder %s15, 3
      %p124 = pnand %p122, %p123
      %p125 = pneg %p124
      // Predicated region
      $region9: #{tpu_custom_call.1} parent=5 // pred_check
        _
      $region10: #{tpu_custom_call.1} parent=5 // pred_check_branch
        %127 = sbr.rel (%p124) target = $region12
      $region11: #{tpu_custom_call.1} parent=5 // pred_region
        %s128 = ssub.s32 %s15, 1
        // Predicated region
        $region13: #{tpu_custom_call.1} parent=11 // pred_check
          %p129 = pneg %p62
        $region14: #{tpu_custom_call.1} parent=11 // pred_check_branch
          %131 = sbr.rel (%p129) target = $region16
        $region15: #{tpu_custom_call.1} parent=11 // pred_region
          _
        $region16: #{tpu_custom_call.1} parent=11 // pred_fallthru
          _
      $region12: #{tpu_custom_call.1} parent=5 // pred_fallthru
        _
      %p132 = scmp.lt.s32.totalorder %s15, 2
      // Predicated region
      $region17: #{tpu_custom_call.1} parent=5 // pred_check
        %p133 = pneg %p132
      $region18: #{tpu_custom_call.1} parent=5 // pred_check_branch
        %135 = sbr.rel (%p133) target = $region20
      $region19: #{tpu_custom_call.1} parent=5 // pred_region
        // Predicated region
        $region21: #{tpu_custom_call.1} parent=19 // pred_check
          %p136 = pneg %p35
        $region22: #{tpu_custom_call.1} parent=19 // pred_check_branch
          %138 = sbr.rel (%p136) target = $region24
        $region23: #{tpu_custom_call.1} parent=19 // pred_region
          %s139 = smul.u32 2, %s15
          %p140 = scmp.lt.s32.totalorder %s139, 3
          %s141 = scalar_select %p140, %s139, 3
          %s142 = smul.addr %s141, 8
          %s143 = scalar_lea.vmem %s0, %s142
          %s144 = smul.u32 2, %s15
        $region24: #{tpu_custom_call.1} parent=19 // pred_fallthru
          _
        // Predicated region
        $region25: #{tpu_custom_call.1} parent=19 // pred_check
          %p145 = pneg %p82
        $region26: #{tpu_custom_call.1} parent=19 // pred_check_branch
          %147 = sbr.rel (%p145) target = $region28
        $region27: #{tpu_custom_call.1} parent=19 // pred_region
          %s148 = sand.u32 %s72, 1
          %s149 = scalar_lea.sflag [#allocation3], %s148
          %s150 = sand.u32 %s72, 1
          %s151 = smul.addr %s150, 8
          %s152 = scalar_lea.vmem [#allocation2], %s151
          %154 = vsyncadd %s149, 0
          %s155 = smul.addr %s15, 8
          %s156 = scalar_lea.hbm %s2, %s155
          %s158 = sshll.u32 %s156, 4
          %s159 = int_to_ptr.hbm [resolvable:$true] %s158
          %s160 = sshll.u32 %s152, 4
          %s161 = int_to_ptr.vmem [resolvable:$true] %s160
          %163 = dma.hbm_to_vmem [thread:$0]  %s159, 128, %s161, %s149
        $region28: #{tpu_custom_call.1} parent=19 // pred_fallthru
          _
      $region20: #{tpu_custom_call.1} parent=5 // pred_fallthru
        _
      %p164 = scmp.le.s32.totalorder 1, %s15
      %p165 = scmp.lt.s32.totalorder %s15, 3
      %p166 = pnand %p164, %p165
      %p167 = pneg %p166
      // Predicated region
      $region29: #{tpu_custom_call.1} parent=5 // pred_check
        _
      $region30: #{tpu_custom_call.1} parent=5 // pred_check_branch
        %169 = sbr.rel (%p166) target = $region32
      $region31: #{tpu_custom_call.1} parent=5 // pred_region
        %s170 = ssub.s32 %s15, 1
        %s171 = sand.u32 %s75, 1
        %s172 = scalar_lea.sflag [#allocation3], %s171
        %s173 = sand.u32 %s75, 1
        %s174 = smul.addr %s173, 8
        %s175 = scalar_lea.vmem [#allocation2], %s174
        // Predicated region
        $region33: #{tpu_custom_call.1} parent=31 // pred_check
          %p176 = pneg %p88
        $region34: #{tpu_custom_call.1} parent=31 // pred_check_branch
          %178 = sbr.rel (%p176) target = $region36
        $region35: #{tpu_custom_call.1} parent=31 // pred_region
          %180 = dma.done %s172, 128
        $region36: #{tpu_custom_call.1} parent=31 // pred_fallthru
          _
        %s181 = smul.u32 2, %s20
        %p182 = scmp.lt.s32.totalorder %s181, 3
        %s183 = scalar_select %p182, %s181, 3
        %s184 = smul.addr %s183, 8
        %s185 = scalar_lea.vmem %s0, %s184
        %p186 = pneg %p41
        %p187 = pneg %p38
        %p188 = pneg %p62
        %p189 = pneg %p59
        %s190 = sand.u32 %s75, 1
        %s191 = scalar_lea.sflag [#allocation3], %s190
        %s192 = sand.u32 %s75, 1
        %s193 = smul.addr %s192, 8
        %s194 = scalar_lea.vmem [#allocation2], %s193
        %p195 = pneg %p88
        %p196 = pneg %p85
        %p197 = pneg %p114
        %p198 = pneg %p111
        %s199 = sand.u32 %s101, 1
        %s200 = scalar_lea.sflag [#allocation4], %s199
        %s201 = sand.u32 %s101, 1
        %s202 = smul.addr %s201, 16
        %s203 = scalar_lea.vmem [#allocation5], %s202
        %s204 = smul.u32 2, %s20
        %p205 = scmp.lt.s32.totalorder %s204, 3
        %s206 = scalar_select %p205, %s204, 3
        %s207 = smul.addr %s206, 8
        %s208 = scalar_lea.vmem %s0, %s207
        %s209 = smul.u32 2, %s20
        %s210 = smul.u32 2, %s20
        %v211 = vld [vmem:[%s208] sm:$0xff]
        %v212 = vld [vmem:[%s208 + $0x8] sm:$0xff]
        %v213 = vlaneseq
        %v214 = vand.u32 %v213, 127
        %215 = vset.pattern.permute.xlu0 0
        %216 = vperm.xlu0 %215, %v211
        %v217 = vpop.permute.xlu0 %216
        %218 = vset.pattern.permute.xlu0 0
        %219 = vperm.xlu0 %218, %v212
        %v220 = vpop.permute.xlu0 %219
        %vm221 = vcmp.eq.s32.totalorder %v217, %v214
        %vm222 = vcmp.eq.s32.totalorder %v220, %v214
        %v223 = vsel %vm221, 5.656854, 0.0
        %v224 = vsel %vm222, 5.656854, 0.0
        %v225 = vld [vmem:[%s1] sm:$0xff]
        %v226 = vld [vmem:[%s1 + $0x8] sm:$0xff]
        %v227 = vld [vmem:[%s1 + $0x10] sm:$0xff]
        %v228 = vld [vmem:[%s1 + $0x18] sm:$0xff]
        %v229 = vlaneseq
        %v230 = vshrl.u32 %v229, 7
        %v231 = vadd.s32 %v230, 8
        %v232 = vmul.u32 %v214, 2
        %vm233 = vcmp.ge.s32.totalorder %v230, %v232
        %vm234 = vcmp.ge.s32.totalorder %v231, %v232
        %v235 = vadd.s32 %v232, 2
        %vm236 = vcmp.lt.s32.totalorder %v230, %v235
        %vm237 = vcmp.lt.s32.totalorder %v231, %v235
        %vm238 = vmand %vm233, %vm236
        %vm239 = vmand %vm234, %vm237
        %v240 = vsel %vm238, 1.0, 0.0
        %v241 = vsel %vm239, 1.0, 0.0
        %v242 = vld [vmem:[%s175] sm:$0xff]
        %vm243 = vcmask 64512
        %v245 = vsel %vm243, %v240, 0
        %v248 = vsel %vm243, %v241, 0
        %250 = vmatpush.msra.mxu0 0.0
        %251 = vmatpush.msra.mxu0 0.0
        %252 = vmatpush.msra.mxu0 0.0
        %253 = vmatpush.msra.mxu0 0.0
        %254 = vmatpush.msra.mxu0 0.0
        %255 = vmatpush.msra.mxu0 0.0
        %256 = vmatpush.msra.mxu0 0.0
        %257 = vmatpush.msra.mxu0 0.0
        %258 = vmatpush.msra.mxu0 0.0
        %259 = vmatpush.msra.mxu0 0.0
        %260 = vmatpush.msra.mxu0 0.0
        %261 = vmatpush.msra.mxu0 0.0
        %262 = vmatpush.msra.mxu0 0.0
        %263 = vmatpush.msra.mxu0 0.0
        %264 = vmatpush.msra.mxu0 0.0
        %v265 = vand.u32 %v242, 4294901760
        %266 = vmatpush.msra.mxu0 %v265
        %v267 = vand.u32 %v245, 4294901760
        %v268 = vsub.f32 %v245, %v267
        %v269 = vand.u32 %v268, 4294901760
        %v270 = vsub.f32 %v268, %v269
        %v271 = vand.u32 %v270, 4294901760
        %272 = vmatmul.f32.gmra.mxu0 %v271
        %v273 = vpop.f32.mrf.mxu0
        %v274 = vadd.f32 0.0, %v273
        %v275 = vand.u32 %v248, 4294901760
        %v276 = vsub.f32 %v248, %v275
        %v277 = vand.u32 %v276, 4294901760
        %v278 = vsub.f32 %v276, %v277
        %v279 = vand.u32 %v278, 4294901760
        %280 = vmatmul.f32.gmra.mxu0 %v279
        %v281 = vpop.f32.mrf.mxu0
        %v282 = vadd.f32 0.0, %v281
        %283 = vdwg.mxu0
        %284 = vmatpush.msra.mxu0 0.0
        %285 = vmatpush.msra.mxu0 0.0
        %286 = vmatpush.msra.mxu0 0.0
        %287 = vmatpush.msra.mxu0 0.0
        %288 = vmatpush.msra.mxu0 0.0
        %289 = vmatpush.msra.mxu0 0.0
        %290 = vmatpush.msra.mxu0 0.0
        %291 = vmatpush.msra.mxu0 0.0
        %292 = vmatpush.msra.mxu0 0.0
        %293 = vmatpush.msra.mxu0 0.0
        %294 = vmatpush.msra.mxu0 0.0
        %295 = vmatpush.msra.mxu0 0.0
        %296 = vmatpush.msra.mxu0 0.0
        %297 = vmatpush.msra.mxu0 0.0
        %298 = vmatpush.msra.mxu0 0.0
        %v299 = vand.u32 %v242, 4294901760
        %v300 = vsub.f32 %v242, %v299
        %v301 = vand.u32 %v300, 4294901760
        %v302 = vsub.f32 %v300, %v301
        %v303 = vand.u32 %v302, 4294901760
        %304 = vmatpush.msra.mxu0 %v303
        %v305 = vand.u32 %v245, 4294901760
        %306 = vmatmul.f32.gmra.mxu0 %v305
        %v307 = vpop.f32.mrf.mxu0
        %v308 = vadd.f32 %v274, %v307
        %v309 = vand.u32 %v248, 4294901760
        %310 = vmatmul.f32.gmra.mxu0 %v309
        %v311 = vpop.f32.mrf.mxu0
        %v312 = vadd.f32 %v282, %v311
        %313 = vdwg.mxu0
        %314 = vmatpush.msra.mxu0 0.0
        %315 = vmatpush.msra.mxu0 0.0
        %316 = vmatpush.msra.mxu0 0.0
        %317 = vmatpush.msra.mxu0 0.0
        %318 = vmatpush.msra.mxu0 0.0
        %319 = vmatpush.msra.mxu0 0.0
        %320 = vmatpush.msra.mxu0 0.0
        %321 = vmatpush.msra.mxu0 0.0
        %322 = vmatpush.msra.mxu0 0.0
        %323 = vmatpush.msra.mxu0 0.0
        %324 = vmatpush.msra.mxu0 0.0
        %325 = vmatpush.msra.mxu0 0.0
        %326 = vmatpush.msra.mxu0 0.0
        %327 = vmatpush.msra.mxu0 0.0
        %328 = vmatpush.msra.mxu0 0.0
        %v329 = vand.u32 %v242, 4294901760
        %v330 = vsub.f32 %v242, %v329
        %331 = vmatpush.msra.mxu0 %v330
        %v332 = vand.u32 %v245, 4294901760
        %v333 = vsub.f32 %v245, %v332
        %334 = vmatmul.f32.gmra.mxu0 %v333
        %v335 = vpop.f32.mrf.mxu0
        %v336 = vadd.f32 %v308, %v335
        %v337 = vand.u32 %v248, 4294901760
        %v338 = vsub.f32 %v248, %v337
        %339 = vmatmul.f32.gmra.mxu0 %v338
        %v340 = vpop.f32.mrf.mxu0
        %v341 = vadd.f32 %v312, %v340
        %342 = vdwg.mxu0
        %343 = vmatpush.msra.mxu0 0.0
        %344 = vmatpush.msra.mxu0 0.0
        %345 = vmatpush.msra.mxu0 0.0
        %346 = vmatpush.msra.mxu0 0.0
        %347 = vmatpush.msra.mxu0 0.0
        %348 = vmatpush.msra.mxu0 0.0
        %349 = vmatpush.msra.mxu0 0.0
        %350 = vmatpush.msra.mxu0 0.0
        %351 = vmatpush.msra.mxu0 0.0
        %352 = vmatpush.msra.mxu0 0.0
        %353 = vmatpush.msra.mxu0 0.0
        %354 = vmatpush.msra.mxu0 0.0
        %355 = vmatpush.msra.mxu0 0.0
        %356 = vmatpush.msra.mxu0 0.0
        %357 = vmatpush.msra.mxu0 0.0
        %v358 = vand.u32 %v242, 4294901760
        %359 = vmatpush.msra.mxu0 %v358
        %v360 = vand.u32 %v245, 4294901760
        %v361 = vsub.f32 %v245, %v360
        %v362 = vand.u32 %v361, 4294901760
        %363 = vmatmul.f32.gmra.mxu0 %v362
        %v364 = vpop.f32.mrf.mxu0
        %v365 = vadd.f32 %v336, %v364
        %v366 = vand.u32 %v248, 4294901760
        %v367 = vsub.f32 %v248, %v366
        %v368 = vand.u32 %v367, 4294901760
        %369 = vmatmul.f32.gmra.mxu0 %v368
        %v370 = vpop.f32.mrf.mxu0
        %v371 = vadd.f32 %v341, %v370
        %372 = vdwg.mxu0
        %373 = vmatpush.msra.mxu0 0.0
        %374 = vmatpush.msra.mxu0 0.0
        %375 = vmatpush.msra.mxu0 0.0
        %376 = vmatpush.msra.mxu0 0.0
        %377 = vmatpush.msra.mxu0 0.0
        %378 = vmatpush.msra.mxu0 0.0
        %379 = vmatpush.msra.mxu0 0.0
        %380 = vmatpush.msra.mxu0 0.0
        %381 = vmatpush.msra.mxu0 0.0
        %382 = vmatpush.msra.mxu0 0.0
        %383 = vmatpush.msra.mxu0 0.0
        %384 = vmatpush.msra.mxu0 0.0
        %385 = vmatpush.msra.mxu0 0.0
        %386 = vmatpush.msra.mxu0 0.0
        %387 = vmatpush.msra.mxu0 0.0
        %v388 = vand.u32 %v242, 4294901760
        %v389 = vsub.f32 %v242, %v388
        %v390 = vand.u32 %v389, 4294901760
        %391 = vmatpush.msra.mxu0 %v390
        %v392 = vand.u32 %v245, 4294901760
        %393 = vmatmul.f32.gmra.mxu0 %v392
        %v394 = vpop.f32.mrf.mxu0
        %v395 = vadd.f32 %v365, %v394
        %v396 = vand.u32 %v248, 4294901760
        %397 = vmatmul.f32.gmra.mxu0 %v396
        %v398 = vpop.f32.mrf.mxu0
        %v399 = vadd.f32 %v371, %v398
        %400 = vdwg.mxu0
        %401 = vmatpush.msra.mxu0 0.0
        %402 = vmatpush.msra.mxu0 0.0
        %403 = vmatpush.msra.mxu0 0.0
        %404 = vmatpush.msra.mxu0 0.0
        %405 = vmatpush.msra.mxu0 0.0
        %406 = vmatpush.msra.mxu0 0.0
        %407 = vmatpush.msra.mxu0 0.0
        %408 = vmatpush.msra.mxu0 0.0
        %409 = vmatpush.msra.mxu0 0.0
        %410 = vmatpush.msra.mxu0 0.0
        %411 = vmatpush.msra.mxu0 0.0
        %412 = vmatpush.msra.mxu0 0.0
        %413 = vmatpush.msra.mxu0 0.0
        %414 = vmatpush.msra.mxu0 0.0
        %415 = vmatpush.msra.mxu0 0.0
        %v416 = vand.u32 %v242, 4294901760
        %417 = vmatpush.msra.mxu0 %v416
        %v418 = vand.u32 %v245, 4294901760
        %419 = vmatmul.f32.gmra.mxu0 %v418
        %v420 = vpop.f32.mrf.mxu0
        %v421 = vadd.f32 %v395, %v420
        %v422 = vand.u32 %v248, 4294901760
        %423 = vmatmul.f32.gmra.mxu0 %v422
        %v424 = vpop.f32.mrf.mxu0
        %v425 = vadd.f32 %v399, %v424
        %426 = vdwg.mxu0
        %vm427 = vcmask 261120
        %v429 = vsel %vm427, %v223, 0
        %v432 = vsel %vm427, %v224, 0
        %434 = vmatpush.msra.mxu0 0.0
        %435 = vmatpush.msra.mxu0 0.0
        %436 = vmatpush.msra.mxu0 0.0
        %437 = vmatpush.msra.mxu0 0.0
        %438 = vmatpush.msra.mxu0 0.0
        %439 = vmatpush.msra.mxu0 0.0
        %440 = vmatpush.msra.mxu0 0.0
        %441 = vmatpush.msra.mxu0 0.0
        %442 = vmatpush.msra.mxu0 0.0
        %443 = vmatpush.msra.mxu0 0.0
        %444 = vmatpush.msra.mxu0 0.0
        %445 = vmatpush.msra.mxu0 0.0
        %v446 = vand.u32 %v228, 4294901760
        %447 = vmatpush.msra.mxu0 %v446
        %v448 = vand.u32 %v227, 4294901760
        %449 = vmatpush.msra.mxu0 %v448
        %v450 = vand.u32 %v226, 4294901760
        %451 = vmatpush.msra.mxu0 %v450
        %v452 = vand.u32 %v225, 4294901760
        %453 = vmatpush.msra.mxu0 %v452
        %v454 = vand.u32 %v429, 4294901760
        %v455 = vsub.f32 %v429, %v454
        %v456 = vand.u32 %v455, 4294901760
        %v457 = vsub.f32 %v455, %v456
        %v458 = vand.u32 %v457, 4294901760
        %459 = vmatmul.f32.gmra.mxu0 %v458
        %v460 = vpop.f32.mrf.mxu0
        %v461 = vadd.f32 %v421, %v460
        %v462 = vand.u32 %v432, 4294901760
        %v463 = vsub.f32 %v432, %v462
        %v464 = vand.u32 %v463, 4294901760
        %v465 = vsub.f32 %v463, %v464
        %v466 = vand.u32 %v465, 4294901760
        %467 = vmatmul.f32.gmra.mxu0 %v466
        %v468 = vpop.f32.mrf.mxu0
        %v469 = vadd.f32 %v425, %v468
        %470 = vdwg.mxu0
        %471 = vmatpush.msra.mxu0 0.0
        %472 = vmatpush.msra.mxu0 0.0
        %473 = vmatpush.msra.mxu0 0.0
        %474 = vmatpush.msra.mxu0 0.0
        %475 = vmatpush.msra.mxu0 0.0
        %476 = vmatpush.msra.mxu0 0.0
        %477 = vmatpush.msra.mxu0 0.0
        %478 = vmatpush.msra.mxu0 0.0
        %479 = vmatpush.msra.mxu0 0.0
        %480 = vmatpush.msra.mxu0 0.0
        %481 = vmatpush.msra.mxu0 0.0
        %482 = vmatpush.msra.mxu0 0.0
        %v483 = vand.u32 %v228, 4294901760
        %v484 = vsub.f32 %v228, %v483
        %v485 = vand.u32 %v484, 4294901760
        %v486 = vsub.f32 %v484, %v485
        %v487 = vand.u32 %v486, 4294901760
        %488 = vmatpush.msra.mxu0 %v487
        %v489 = vand.u32 %v227, 4294901760
        %v490 = vsub.f32 %v227, %v489
        %v491 = vand.u32 %v490, 4294901760
        %v492 = vsub.f32 %v490, %v491
        %v493 = vand.u32 %v492, 4294901760
        %494 = vmatpush.msra.mxu0 %v493
        %v495 = vand.u32 %v226, 4294901760
        %v496 = vsub.f32 %v226, %v495
        %v497 = vand.u32 %v496, 4294901760
        %v498 = vsub.f32 %v496, %v497
        %v499 = vand.u32 %v498, 4294901760
        %500 = vmatpush.msra.mxu0 %v499
        %v501 = vand.u32 %v225, 4294901760
        %v502 = vsub.f32 %v225, %v501
        %v503 = vand.u32 %v502, 4294901760
        %v504 = vsub.f32 %v502, %v503
        %v505 = vand.u32 %v504, 4294901760
        %506 = vmatpush.msra.mxu0 %v505
        %v507 = vand.u32 %v429, 4294901760
        %508 = vmatmul.f32.gmra.mxu0 %v507
        %v509 = vpop.f32.mrf.mxu0
        %v510 = vadd.f32 %v461, %v509
        %v511 = vand.u32 %v432, 4294901760
        %512 = vmatmul.f32.gmra.mxu0 %v511
        %v513 = vpop.f32.mrf.mxu0
        %v514 = vadd.f32 %v469, %v513
        %515 = vdwg.mxu0
        %516 = vmatpush.msra.mxu0 0.0
        %517 = vmatpush.msra.mxu0 0.0
        %518 = vmatpush.msra.mxu0 0.0
        %519 = vmatpush.msra.mxu0 0.0
        %520 = vmatpush.msra.mxu0 0.0
        %521 = vmatpush.msra.mxu0 0.0
        %522 = vmatpush.msra.mxu0 0.0
        %523 = vmatpush.msra.mxu0 0.0
        %524 = vmatpush.msra.mxu0 0.0
        %525 = vmatpush.msra.mxu0 0.0
        %526 = vmatpush.msra.mxu0 0.0
        %527 = vmatpush.msra.mxu0 0.0
        %v528 = vand.u32 %v228, 4294901760
        %v529 = vsub.f32 %v228, %v528
        %530 = vmatpush.msra.mxu0 %v529
        %v531 = vand.u32 %v227, 4294901760
        %v532 = vsub.f32 %v227, %v531
        %533 = vmatpush.msra.mxu0 %v532
        %v534 = vand.u32 %v226, 4294901760
        %v535 = vsub.f32 %v226, %v534
        %536 = vmatpush.msra.mxu0 %v535
        %v537 = vand.u32 %v225, 4294901760
        %v538 = vsub.f32 %v225, %v537
        %539 = vmatpush.msra.mxu0 %v538
        %v540 = vand.u32 %v429, 4294901760
        %v541 = vsub.f32 %v429, %v540
        %542 = vmatmul.f32.gmra.mxu0 %v541
        %v543 = vpop.f32.mrf.mxu0
        %v544 = vadd.f32 %v510, %v543
        %v545 = vand.u32 %v432, 4294901760
        %v546 = vsub.f32 %v432, %v545
        %547 = vmatmul.f32.gmra.mxu0 %v546
        %v548 = vpop.f32.mrf.mxu0
        %v549 = vadd.f32 %v514, %v548
        %550 = vdwg.mxu0
        %551 = vmatpush.msra.mxu0 0.0
        %552 = vmatpush.msra.mxu0 0.0
        %553 = vmatpush.msra.mxu0 0.0
        %554 = vmatpush.msra.mxu0 0.0
        %555 = vmatpush.msra.mxu0 0.0
        %556 = vmatpush.msra.mxu0 0.0
        %557 = vmatpush.msra.mxu0 0.0
        %558 = vmatpush.msra.mxu0 0.0
        %559 = vmatpush.msra.mxu0 0.0
        %560 = vmatpush.msra.mxu0 0.0
        %561 = vmatpush.msra.mxu0 0.0
        %562 = vmatpush.msra.mxu0 0.0
        %v563 = vand.u32 %v228, 4294901760
        %564 = vmatpush.msra.mxu0 %v563
        %v565 = vand.u32 %v227, 4294901760
        %566 = vmatpush.msra.mxu0 %v565
        %v567 = vand.u32 %v226, 4294901760
        %568 = vmatpush.msra.mxu0 %v567
        %v569 = vand.u32 %v225, 4294901760
        %570 = vmatpush.msra.mxu0 %v569
        %v571 = vand.u32 %v429, 4294901760
        %v572 = vsub.f32 %v429, %v571
        %v573 = vand.u32 %v572, 4294901760
        %574 = vmatmul.f32.gmra.mxu0 %v573
        %v575 = vpop.f32.mrf.mxu0
        %v576 = vadd.f32 %v544, %v575
        %v577 = vand.u32 %v432, 4294901760
        %v578 = vsub.f32 %v432, %v577
        %v579 = vand.u32 %v578, 4294901760
        %580 = vmatmul.f32.gmra.mxu0 %v579
        %v581 = vpop.f32.mrf.mxu0
        %v582 = vadd.f32 %v549, %v581
        %583 = vdwg.mxu0
        %584 = vmatpush.msra.mxu0 0.0
        %585 = vmatpush.msra.mxu0 0.0
        %586 = vmatpush.msra.mxu0 0.0
        %587 = vmatpush.msra.mxu0 0.0
        %588 = vmatpush.msra.mxu0 0.0
        %589 = vmatpush.msra.mxu0 0.0
        %590 = vmatpush.msra.mxu0 0.0
        %591 = vmatpush.msra.mxu0 0.0
        %592 = vmatpush.msra.mxu0 0.0
        %593 = vmatpush.msra.mxu0 0.0
        %594 = vmatpush.msra.mxu0 0.0
        %595 = vmatpush.msra.mxu0 0.0
        %v596 = vand.u32 %v228, 4294901760
        %v597 = vsub.f32 %v228, %v596
        %v598 = vand.u32 %v597, 4294901760
        %599 = vmatpush.msra.mxu0 %v598
        %v600 = vand.u32 %v227, 4294901760
        %v601 = vsub.f32 %v227, %v600
        %v602 = vand.u32 %v601, 4294901760
        %603 = vmatpush.msra.mxu0 %v602
        %v604 = vand.u32 %v226, 4294901760
        %v605 = vsub.f32 %v226, %v604
        %v606 = vand.u32 %v605, 4294901760
        %607 = vmatpush.msra.mxu0 %v606
        %v608 = vand.u32 %v225, 4294901760
        %v609 = vsub.f32 %v225, %v608
        %v610 = vand.u32 %v609, 4294901760
        %611 = vmatpush.msra.mxu0 %v610
        %v612 = vand.u32 %v429, 4294901760
        %613 = vmatmul.f32.gmra.mxu0 %v612
        %v614 = vpop.f32.mrf.mxu0
        %v615 = vadd.f32 %v576, %v614
        %v616 = vand.u32 %v432, 4294901760
        %617 = vmatmul.f32.gmra.mxu0 %v616
        %v618 = vpop.f32.mrf.mxu0
        %v619 = vadd.f32 %v582, %v618
        %620 = vdwg.mxu0
        %621 = vmatpush.msra.mxu0 0.0
        %622 = vmatpush.msra.mxu0 0.0
        %623 = vmatpush.msra.mxu0 0.0
        %624 = vmatpush.msra.mxu0 0.0
        %625 = vmatpush.msra.mxu0 0.0
        %626 = vmatpush.msra.mxu0 0.0
        %627 = vmatpush.msra.mxu0 0.0
        %628 = vmatpush.msra.mxu0 0.0
        %629 = vmatpush.msra.mxu0 0.0
        %630 = vmatpush.msra.mxu0 0.0
        %631 = vmatpush.msra.mxu0 0.0
        %632 = vmatpush.msra.mxu0 0.0
        %v633 = vand.u32 %v228, 4294901760
        %634 = vmatpush.msra.mxu0 %v633
        %v635 = vand.u32 %v227, 4294901760
        %636 = vmatpush.msra.mxu0 %v635
        %v637 = vand.u32 %v226, 4294901760
        %638 = vmatpush.msra.mxu0 %v637
        %v639 = vand.u32 %v225, 4294901760
        %640 = vmatpush.msra.mxu0 %v639
        %v641 = vand.u32 %v429, 4294901760
        %642 = vmatmul.f32.gmra.mxu0 %v641
        %v643 = vpop.f32.mrf.mxu0
        %v644 = vadd.f32 %v615, %v643
        %v645 = vand.u32 %v432, 4294901760
        %646 = vmatmul.f32.gmra.mxu0 %v645
        %v647 = vpop.f32.mrf.mxu0
        %v648 = vadd.f32 %v619, %v647
        %649 = vdwg.mxu0
        %650 = vst.msk [vmem:[%s203] sm:$0xff] %vm427, %v644
        %651 = vst.msk [vmem:[%s203 + $0x8] sm:$0xff] %vm427, %v648
        %s652 = sand.u32 %s101, 1
        %s653 = scalar_lea.sflag [#allocation4], %s652
        %s654 = sand.u32 %s101, 1
        %s655 = smul.addr %s654, 16
        %s656 = scalar_lea.vmem [#allocation5], %s655
        // Predicated region
        $region37: #{tpu_custom_call.1} parent=31 // pred_check
          %p657 = pneg %p111
        $region38: #{tpu_custom_call.1} parent=31 // pred_check_branch
          %659 = sbr.rel (%p657) target = $region40
        $region39: #{tpu_custom_call.1} parent=31 // pred_region
          %s660 = smul.u32 2, %s20
          %662 = vsyncadd %s653, 0
          %s663 = smul.addr %s660, 8
          %s664 = scalar_lea.hbm %s3, %s663
          %s665 = sshll.u32 %s656, 4
          %s666 = int_to_ptr.vmem [resolvable:$true] %s665
          %s667 = sshll.u32 %s664, 4
          %s668 = int_to_ptr.hbm [resolvable:$true] %s667
          %673 = dma.vmem_to_hbm [thread:$0]  %s666, 256, %s668, %s653, 128, 128, 8
        $region40: #{tpu_custom_call.1} parent=31 // pred_fallthru
          _
      $region32: #{tpu_custom_call.1} parent=5 // pred_fallthru
        _
      %p674 = scmp.le.s32.totalorder 2, %s15
      // Predicated region
      $region41: #{tpu_custom_call.1} parent=5 // pred_check
        %p675 = pneg %p674
      $region42: #{tpu_custom_call.1} parent=5 // pred_check_branch
        %677 = sbr.rel (%p675) target = $region44
      $region43: #{tpu_custom_call.1} parent=5 // pred_region
        %s678 = ssub.s32 %s15, 2
        // Predicated region
        $region45: #{tpu_custom_call.1} parent=43 // pred_check
          %p679 = pneg %p117
        $region46: #{tpu_custom_call.1} parent=43 // pred_check_branch
          %681 = sbr.rel (%p679) target = $region48
        $region47: #{tpu_custom_call.1} parent=43 // pred_region
          %s682 = sand.u32 %s102, 1
          %s683 = scalar_lea.sflag [#allocation4], %s682
          %s684 = sand.u32 %s102, 1
          %s685 = smul.addr %s684, 16
          %s686 = scalar_lea.vmem [#allocation5], %s685
          %688 = dma.done %s683, 256
        $region48: #{tpu_custom_call.1} parent=43 // pred_fallthru
          _
      $region44: #{tpu_custom_call.1} parent=5 // pred_fallthru
        _
    $region6: #{tpu_custom_call.1} parent=1 // loop_footer
      %s19 = sadd.s32 1, %s15
    $region7: #{tpu_custom_call.1} parent=1 // loop_footer_branch
      %14 = sbr.rel target = $region3
    $region8: #{tpu_custom_call.1} parent=1 // loop_exit
      _
    %689 = vsyncpa [#allocation3], 1
    %s690 = scalar_lea.sflag [#allocation3], 1
    %691 = vsyncpa %s690, 1
    %692 = vsyncpa [#allocation4], 1
    %s693 = scalar_lea.sflag [#allocation4], 1
    %694 = vsyncpa %s693, 1

</llo_original>
